<compile_context>
chip_gen: v7x
topology: tpu7x:2x2x1
jax: 0.10.0
libtpu: 0.0.40
codegen_flags: <defaults>
</compile_context>

<pallas_src>
import functools

import jax
import jax.numpy as jnp
from jax.experimental import pallas as pl
from jax.experimental.pallas import tpu as pltpu

IDC = 1          # self.idc = [1] in the PyTorch module
LANES = 128


def _round_up(x, m):
    return (x + m - 1) // m * m


def _cdiv(a, b):
    return (a + b - 1) // b


# ---------------------------------------------------------------------------
# Glue: exact SQUARED Euclidean distance transform of a binary mask (matches
# scipy.ndimage.distance_transform_edt**2 for non-degenerate masks).
# TODO(synk): the reference uses scipy's sequential CPU EDT (one_hot2hd_dist);
# no clean Pallas equivalent exists, so this is plain-JAX glue (brute-force
# pairwise, exact, intended for small demo spatial extents only).
# ---------------------------------------------------------------------------
def _edt_sq_2d(mask_hw):
    H, W = mask_hw.shape
    yy, xx = jnp.meshgrid(jnp.arange(H, dtype=jnp.float32),
                          jnp.arange(W, dtype=jnp.float32), indexing="ij")
    coords = jnp.stack([yy.ravel(), xx.ravel()], axis=-1)            # (N, 2)
    m = mask_hw.ravel()                                              # (N,) bool
    d2 = jnp.sum((coords[:, None, :] - coords[None, :, :]) ** 2, axis=-1)
    big = jnp.float32(1e12)
    d2_to_bg = jnp.where(m[None, :], big, d2)      # only background columns count
    nearest_sq = jnp.min(d2_to_bg, axis=-1)
    dist_sq = jnp.where(m, nearest_sq, 0.0)        # 0 at background pixels
    dist_sq = jnp.where(jnp.any(~m), dist_sq, 0.0)  # degenerate: no background
    dist_sq = jnp.where(jnp.any(m), dist_sq, 0.0)   # one_hot2hd_dist skips empty masks
    return dist_sq.reshape(H, W)


def _distance_maps_sq(probs, target):
    """tdm^2, pdm^2 as (B, H, W) float32 (mirrors the CPU/numpy path)."""
    tc_mask = target[:, 0, :, :] > 0.5
    tdm2 = jax.vmap(_edt_sq_2d)(tc_mask)
    # probs2one_hot(probs)[:, IDC]  ==  (argmax over channels == IDC)
    pred_fg = jnp.argmax(probs, axis=1) == IDC
    pdm2 = jax.vmap(_edt_sq_2d)(pred_fg)
    return tdm2.astype(jnp.float32), pdm2.astype(jnp.float32)


# ---------------------------------------------------------------------------
# Pallas kernel: streaming reduction of (pc - tc)^2 * (tdm^2 + pdm^2).
# Squared distance maps are streamed directly (3 VPU ops / element); the sum
# is accumulated PER LANE in a VMEM scratch and the single cross-lane (XLU)
# reduce happens once per core-split at the very end.
# ---------------------------------------------------------------------------
def _hausdorff_kernel(pc_ref, tc_ref, tdm2_ref, pdm2_ref, out_ref, acc_ref):
    s = pl.program_id(1)

    delta = pc_ref[...] - tc_ref[...]
    prod = delta * delta * (tdm2_ref[...] + pdm2_ref[...])

    @pl.when(s == 0)
    def _first():
        acc_ref[...] = prod            # overwrite: saves the zero-init pass

    @pl.when(s != 0)
    def _rest():
        acc_ref[...] += prod

    @pl.when(s == pl.num_programs(1) - 1)
    def _finalize():
        psum = jnp.sum(acc_ref[...])
        # Lane-dense output block; the wrapper reads element [p, 0, 0].
        out_ref[...] = jnp.full(out_ref.shape, psum, dtype=jnp.float32)


@functools.partial(jax.jit, static_argnames=("block_elems", "core_split"))
def hausdorff_loss_pallas(probs, target, block_elems=256 * 1024, core_split=1):
    """probs: (B, K, H, W) simplex over K; target: (B, 1, H, W) binary mask.

    block_elems: ~f32 elements per per-input block (default ~1 MiB blocks).
    core_split:  1 on single-TensorCore chips (v5e/v6e); 2 on v7x to shard the
                 stream across both TensorCores via CORE_PARALLEL.
    """
    B, K, H, W = probs.shape
    N = B * H * W

    pc = probs[:, IDC, :, :].astype(jnp.float32).reshape(-1)
    tc = target[:, 0, :, :].astype(jnp.float32).reshape(-1)
    tdm2, pdm2 = _distance_maps_sq(probs, target)
    tdm2 = tdm2.reshape(-1)
    pdm2 = pdm2.reshape(-1)

    # Layout: flatten (B, H, W) into one axis (no B->8 sublane padding),
    # reshape to a lane-dense (rows, C) slab, tile in ~block_elems chunks.
    # Only the flat tail is zero-padded; zeros contribute exactly 0 to the sum.
    C = 1024 if N >= 1024 else _round_up(N, LANES)
    R = _cdiv(N, C)
    rows_target = max(1, block_elems // C)
    rb = min(rows_target, R)
    if not (core_split == 1 and rb == R):
        rb = _round_up(rb, 8)          # sublane rule, unless full-dim block
    R_pad = _round_up(R, core_split * rb)
    n_tiles = R_pad // (core_split * rb)
    N_pad = R_pad * C

    def _prep(a):
        if N_pad != N:
            a = jnp.pad(a, (0, N_pad - N))   # tail-only pad
        return a.reshape(R_pad, C)

    pc_p, tc_p, tdm2_p, pdm2_p = _prep(pc), _prep(tc), _prep(tdm2), _prep(pdm2)

    in_spec = pl.BlockSpec((rb, C), lambda p, s: (p * n_tiles + s, 0))

    if core_split == 1:
        sem = (pltpu.ARBITRARY, pltpu.ARBITRARY)
    else:
        # v7x: genuinely shard the stream across the TensorCores.
        sem = (pltpu.CORE_PARALLEL, pltpu.ARBITRARY)

    # VMEM: 4 inputs x 2 pipeline buffers + f32 accumulator ~ 9 live blocks.
    block_bytes = rb * C * 4
    vmem_need = 10 * block_bytes
    vmem_limit = None if vmem_need <= (16 << 20) else min(vmem_need, 48 << 20)

    partials = pl.pallas_call(
        _hausdorff_kernel,
        out_shape=jax.ShapeDtypeStruct((core_split, 8, 128), jnp.float32),
        grid_spec=pltpu.PrefetchScalarGridSpec(
            num_scalar_prefetch=0,
            grid=(core_split, n_tiles),
            in_specs=[in_spec, in_spec, in_spec, in_spec],
            out_specs=pl.BlockSpec((1, 8, 128), lambda p, s: (p, 0, 0)),
            scratch_shapes=[pltpu.VMEM((rb, C), jnp.float32)],
        ),
        compiler_params=pltpu.CompilerParams(
            dimension_semantics=sem,
            vmem_limit_bytes=vmem_limit,
        ),
    )(pc_p, tc_p, tdm2_p, pdm2_p)

    count = jnp.float32(B * 1 * H * W)   # mean over (B, len(idc), H, W) elements
    return jnp.sum(partials[:, 0, 0]) / count


def hausdorff_loss_ref(probs, target):
    """Pure-JAX reference mirroring the PyTorch HausdorffLoss forward."""
    pc = probs[:, IDC, :, :].astype(jnp.float32)
    tc = target[:, 0, :, :].astype(jnp.float32)
    tdm2, pdm2 = _distance_maps_sq(probs, target)
    delta = (pc - tc) ** 2
    dtm = tdm2 + pdm2                     # == tdm**2 + pdm**2
    return jnp.mean(delta * dtm)


if __name__ == "__main__":
    key = jax.random.PRNGKey(0)
    kx, ky = jax.random.split(key)

    B, K, H, W = 2, 4, 16, 16
    logits = jax.random.normal(kx, (B, K, H, W), dtype=jnp.float32)
    probs = jax.nn.softmax(logits, axis=1)                       # simplex over K
    target = (jax.random.uniform(ky, (B, 1, H, W)) > 0.5).astype(jnp.float32)

    loss = hausdorff_loss_pallas(probs, target)
    jax.block_until_ready(loss)

    ref = hausdorff_loss_ref(probs, target)
    assert jnp.allclose(loss, ref, rtol=1e-5, atol=1e-5), (loss, ref)

    print("KERNEL_OK")
</pallas_src>

<mosaic_0001>
module attributes {stable_mosaic.version = 11 : i64} {
  func.func @_hausdorff_kernel(%arg0: i32, %arg1: i32, %arg2: memref<1x512xf32, #tpu.memory_space<vmem>>, %arg3: memref<1x512xf32, #tpu.memory_space<vmem>>, %arg4: memref<1x512xf32, #tpu.memory_space<vmem>>, %arg5: memref<1x512xf32, #tpu.memory_space<vmem>>, %arg6: memref<1x8x128xf32, #tpu.memory_space<vmem>>, %arg7: memref<1x512xf32, #tpu.memory_space<vmem>>) attributes {dimension_semantics = [#tpu.dimension_semantics<arbitrary>, #tpu.dimension_semantics<arbitrary>], iteration_bounds = array<i64: 1, 1>, scalar_prefetch = 0 : i64, scratch_operands = 1 : i64, tpu.core_type = #tpu.core_type<tc>, window_params = [{transform_indices = @transform_0, window_bounds = array<i64: 1, 512>}, {transform_indices = @transform_1, window_bounds = array<i64: 1, 512>}, {transform_indices = @transform_2, window_bounds = array<i64: 1, 512>}, {transform_indices = @transform_3, window_bounds = array<i64: 1, 512>}, {transform_indices = @transform_4, window_bounds = array<i64: 1, 8, 128>}]} {
    %c0 = arith.constant 0 : index
    %c0_0 = arith.constant 0 : index
    %0 = vector.load %arg2[%c0, %c0_0] : memref<1x512xf32, #tpu.memory_space<vmem>>, vector<1x512xf32>
    %c0_1 = arith.constant 0 : index
    %c0_2 = arith.constant 0 : index
    %1 = vector.load %arg3[%c0_1, %c0_2] : memref<1x512xf32, #tpu.memory_space<vmem>>, vector<1x512xf32>
    %2 = arith.subf %0, %1 : vector<1x512xf32>
    %3 = arith.mulf %2, %2 : vector<1x512xf32>
    %c0_3 = arith.constant 0 : index
    %c0_4 = arith.constant 0 : index
    %4 = vector.load %arg4[%c0_3, %c0_4] : memref<1x512xf32, #tpu.memory_space<vmem>>, vector<1x512xf32>
    %c0_5 = arith.constant 0 : index
    %c0_6 = arith.constant 0 : index
    %5 = vector.load %arg5[%c0_5, %c0_6] : memref<1x512xf32, #tpu.memory_space<vmem>>, vector<1x512xf32>
    %6 = arith.addf %4, %5 : vector<1x512xf32>
    %7 = arith.mulf %3, %6 : vector<1x512xf32>
    %c0_i32 = arith.constant 0 : i32
    %8 = arith.cmpi eq, %arg1, %c0_i32 : i32
    %9 = arith.extui %8 : i1 to i32
    %c0_i32_7 = arith.constant 0 : i32
    %10 = arith.cmpi ne, %9, %c0_i32_7 : i32
    scf.if %10 {
      %c0_12 = arith.constant 0 : index
      %c0_13 = arith.constant 0 : index
      %17 = vector.load %arg7[%c0_12, %c0_13] : memref<1x512xf32, #tpu.memory_space<vmem>>, vector<1x512xf32>
      tpu.vector_store %arg7[%c0_12, %c0_13], %7 {strides = array<i32>} : memref<1x512xf32, #tpu.memory_space<vmem>>, vector<1x512xf32>,
    } else {
    }
    %c0_i32_8 = arith.constant 0 : i32
    %11 = arith.cmpi ne, %arg1, %c0_i32_8 : i32
    %12 = arith.extui %11 : i1 to i32
    %c0_i32_9 = arith.constant 0 : i32
    %13 = arith.cmpi ne, %12, %c0_i32_9 : i32
    scf.if %13 {
      %c0_12 = arith.constant 0 : index
      %c0_13 = arith.constant 0 : index
      %17 = vector.load %arg7[%c0_12, %c0_13] : memref<1x512xf32, #tpu.memory_space<vmem>>, vector<1x512xf32>
      %18 = arith.addf %17, %7 : vector<1x512xf32>
      %c0_14 = arith.constant 0 : index
      %c0_15 = arith.constant 0 : index
      %19 = vector.load %arg7[%c0_14, %c0_15] : memref<1x512xf32, #tpu.memory_space<vmem>>, vector<1x512xf32>
      tpu.vector_store %arg7[%c0_14, %c0_15], %18 {strides = array<i32>} : memref<1x512xf32, #tpu.memory_space<vmem>>, vector<1x512xf32>,
    } else {
    }
    %c0_i32_10 = arith.constant 0 : i32
    %14 = arith.cmpi eq, %arg1, %c0_i32_10 : i32
    %15 = arith.extui %14 : i1 to i32
    %c0_i32_11 = arith.constant 0 : i32
    %16 = arith.cmpi ne, %15, %c0_i32_11 : i32
    scf.if %16 {
      %c0_12 = arith.constant 0 : index
      %c0_13 = arith.constant 0 : index
      %17 = vector.load %arg7[%c0_12, %c0_13] : memref<1x512xf32, #tpu.memory_space<vmem>>, vector<1x512xf32>
      %18 = vector.shape_cast %17 : vector<1x512xf32> to vector<1x1x512xf32>
      %cst = arith.constant dense<0.000000e+00> : vector<1xf32>
      %19 = vector.multi_reduction <add>, %18, %cst [1, 2] : vector<1x1x512xf32> to vector<1xf32>
      %20 = vector.shape_cast %19 : vector<1xf32> to vector<1x1x1xf32>
      %21 = vector.extract %20[0, 0, 0] : f32 from vector<1x1x1xf32>
      %22 = vector.broadcast %21 : f32 to vector<1x8x128xf32>
      %c0_14 = arith.constant 0 : index
      %c0_15 = arith.constant 0 : index
      %c0_16 = arith.constant 0 : index
      %23 = vector.load %arg6[%c0_14, %c0_15, %c0_16] : memref<1x8x128xf32, #tpu.memory_space<vmem>>, vector<1x8x128xf32>
      tpu.vector_store %arg6[%c0_14, %c0_15, %c0_16], %22 {strides = array<i32>} : memref<1x8x128xf32, #tpu.memory_space<vmem>>, vector<1x8x128xf32>,
    } else {
    }
    return
  }
  func.func @transform_0(%arg0: i32, %arg1: i32) -> (i32, i32) {
    %c1_i32 = arith.constant 1 : i32
    %0 = arith.muli %arg0, %c1_i32 : i32
    %1 = arith.addi %0, %arg1 : i32
    %c0_i32 = arith.constant 0 : i32
    %c0_i32_0 = arith.constant 0 : i32
    return %1, %c0_i32 : i32, i32
  }
  func.func @transform_1(%arg0: i32, %arg1: i32) -> (i32, i32) {
    %c1_i32 = arith.constant 1 : i32
    %0 = arith.muli %arg0, %c1_i32 : i32
    %1 = arith.addi %0, %arg1 : i32
    %c0_i32 = arith.constant 0 : i32
    %c0_i32_0 = arith.constant 0 : i32
    return %1, %c0_i32 : i32, i32
  }
  func.func @transform_2(%arg0: i32, %arg1: i32) -> (i32, i32) {
    %c1_i32 = arith.constant 1 : i32
    %0 = arith.muli %arg0, %c1_i32 : i32
    %1 = arith.addi %0, %arg1 : i32
    %c0_i32 = arith.constant 0 : i32
    %c0_i32_0 = arith.constant 0 : i32
    return %1, %c0_i32 : i32, i32
  }
  func.func @transform_3(%arg0: i32, %arg1: i32) -> (i32, i32) {
    %c1_i32 = arith.constant 1 : i32
    %0 = arith.muli %arg0, %c1_i32 : i32
    %1 = arith.addi %0, %arg1 : i32
    %c0_i32 = arith.constant 0 : i32
    %c0_i32_0 = arith.constant 0 : i32
    return %1, %c0_i32 : i32, i32
  }
  func.func @transform_4(%arg0: i32, %arg1: i32) -> (i32, i32, i32) {
    %c0_i32 = arith.constant 0 : i32
    %c0_i32_0 = arith.constant 0 : i32
    %c0_i32_1 = arith.constant 0 : i32
    return %arg0, %c0_i32, %c0_i32_0 : i32, i32, i32
  }
}

</mosaic_0001>

<llo_original>
// kernel: squeeze.6
$region0: #{squeeze.6}
  %s0 = inlined_call_operand.vmem [shape: f32[2,1,16,16], index: 0, kind: input, shape index: {}]
  %s1 = inlined_call_operand.vmem [shape: f32[1,512], index: 1, kind: output, shape index: {}]
  $region1: #{squeeze.6} parent=0
    #allocation0 [shape = 'u8[16384]{0}', space=vmem, size = 0x4000, scoped, tag = 'scoped mem for output reshape']
    %v2 = vld [vmem:[%s0] ss:$8 sm:$0xf]
    %vm3 = vcmask 130048
    %4 = vst.msk [vmem:[#allocation0] ss:$8 sm:$0xf] %vm3, %v2
    %s5 = scalar_lea.vmem %s0, 7
    %v6 = vld [vmem:[%s5] ss:$8 sm:$0xf]
    %7 = vrot.lane.b32.xlu0 %v6, 112
    %v8 = vpop.permute.xlu0 %7
    %vm9 = vcmask 1048448
    %10 = vst.msk [vmem:[#allocation0] ss:$8 sm:$0xf] %vm9, %v8
    %s11 = scalar_lea.vmem %s0, 6
    %v12 = vld [vmem:[%s11] ss:$8 sm:$0xf]
    %13 = vrot.lane.b32.xlu0 %v12, 96
    %v14 = vpop.permute.xlu0 %13
    %vm15 = vcmask 917248
    %16 = vst.msk [vmem:[#allocation0] ss:$8 sm:$0xf] %vm15, %v14
    %s17 = scalar_lea.vmem %s0, 5
    %v18 = vld [vmem:[%s17] ss:$8 sm:$0xf]
    %19 = vrot.lane.b32.xlu0 %v18, 80
    %v20 = vpop.permute.xlu0 %19
    %vm21 = vcmask 786048
    %22 = vst.msk [vmem:[#allocation0] ss:$8 sm:$0xf] %vm21, %v20
    %s23 = scalar_lea.vmem %s0, 4
    %v24 = vld [vmem:[%s23] ss:$8 sm:$0xf]
    %25 = vrot.lane.b32.xlu0 %v24, 64
    %v26 = vpop.permute.xlu0 %25
    %vm27 = vcmask 654848
    %28 = vst.msk [vmem:[#allocation0] ss:$8 sm:$0xf] %vm27, %v26
    %s29 = scalar_lea.vmem %s0, 3
    %v30 = vld [vmem:[%s29] ss:$8 sm:$0xf]
    %31 = vrot.lane.b32.xlu0 %v30, 48
    %v32 = vpop.permute.xlu0 %31
    %vm33 = vcmask 523648
    %34 = vst.msk [vmem:[#allocation0] ss:$8 sm:$0xf] %vm33, %v32
    %s35 = scalar_lea.vmem %s0, 2
    %v36 = vld [vmem:[%s35] ss:$8 sm:$0xf]
    %37 = vrot.lane.b32.xlu0 %v36, 32
    %v38 = vpop.permute.xlu0 %37
    %vm39 = vcmask 392448
    %40 = vst.msk [vmem:[#allocation0] ss:$8 sm:$0xf] %vm39, %v38
    %s41 = scalar_lea.vmem %s0, 1
    %v42 = vld [vmem:[%s41] ss:$8 sm:$0xf]
    %43 = vrot.lane.b32.xlu0 %v42, 16
    %v44 = vpop.permute.xlu0 %43
    %vm45 = vcmask 261248
    %46 = vst.msk [vmem:[#allocation0] ss:$8 sm:$0xf] %vm45, %v44
    %s48 = sshllo.u32 0, 1
    %v50 = vld [vmem:[#allocation0] sm:%s48]
    %s51 = sshllo.u32 0, 1
    %52 = vst [vmem:[%s1] sm:%s51] %v50
    %s53 = scalar_lea.vmem [#allocation0], 8
    %v54 = vld [vmem:[%s53] sm:%s48]
    %s55 = sshllo.u32 0, 1
    %s56 = scalar_lea.vmem %s1, 1
    %57 = vst [vmem:[%s56] sm:%s55] %v54
    %s58 = scalar_lea.vmem [#allocation0], 16
    %v59 = vld [vmem:[%s58] sm:%s48]
    %s60 = sshllo.u32 0, 1
    %s61 = smul.addr 1, 2
    %s62 = scalar_lea.vmem %s1, %s61
    %63 = vst [vmem:[%s62] sm:%s60] %v59
    %s64 = scalar_lea.vmem [#allocation0], 24
    %v65 = vld [vmem:[%s64] sm:%s48]
    %s66 = sshllo.u32 0, 1
    %s67 = smul.addr 1, 3
    %s68 = scalar_lea.vmem %s1, %s67
    %69 = vst [vmem:[%s68] sm:%s66] %v65

// kernel: hausdorff_loss_pallas.1
$region0: #{hausdorff_loss_pallas.1}
  #allocation0 [shape = 'u32[]', space=smem, size = 0x4, offset = 0x4, fixed_abs, tag = 'smem constant byte address 0x4 - core index']
  #allocation1 [shape = 'u32[144,128]{1,0:T(1,128)}', space=vmem, size = 0x12000, scoped, tag = 'internal scratch']
  #allocation2 [shape = 'f32[1,512]{1,0:T(1,128)}', space=vmem, size = 0x800, scoped, tag = 'scratch operand']
  %s0 = inlined_call_operand.vmem [shape: f32[1,512], index: 0, kind: input, shape index: {}]
  %s1 = inlined_call_operand.vmem [shape: f32[1,512], index: 1, kind: input, shape index: {}]
  %s2 = inlined_call_operand.vmem [shape: f32[1,512], index: 2, kind: input, shape index: {}]
  %s3 = inlined_call_operand.vmem [shape: f32[1,512], index: 3, kind: input, shape index: {}]
  %s4 = inlined_call_operand.vmem [shape: f32[1,8,128], index: 4, kind: output, shape index: {}]
  %s5 = sld [smem:[#allocation0]]
  $region38: #{hausdorff_loss_pallas.1} parent=0
    _
  %s7 = ssub.s32 1, %s5
  %s8 = scalar_select 0, %s7, %s5
  // Predicated region
  $region2: #{hausdorff_loss_pallas.1} parent=0 // pred_check
    _
  $region3: #{hausdorff_loss_pallas.1} parent=0 // pred_check_branch
    %10 = sbr.rel (0) target = $region5
  $region4: #{hausdorff_loss_pallas.1} parent=0 // pred_region
    %s11 = sadd.s32 0, 0
    %p12 = scmp.lt.s32.totalorder %s11, 0
    %s13 = scalar_select %p12, %s11, 0
    %s14 = smul.addr %s13, 4
    %s15 = scalar_lea.vmem %s0, %s14
    %s16 = sadd.s32 0, 0
  $region5: #{hausdorff_loss_pallas.1} parent=0 // pred_fallthru
    _
  // Predicated region
  $region6: #{hausdorff_loss_pallas.1} parent=0 // pred_check
    _
  $region7: #{hausdorff_loss_pallas.1} parent=0 // pred_check_branch
    %18 = sbr.rel (0) target = $region9
  $region8: #{hausdorff_loss_pallas.1} parent=0 // pred_region
    %s19 = sadd.s32 0, 0
    %p20 = scmp.lt.s32.totalorder %s19, 0
    %s21 = scalar_select %p20, %s19, 0
    %s22 = smul.addr %s21, 4
    %s23 = scalar_lea.vmem %s1, %s22
    %s24 = sadd.s32 0, 0
  $region9: #{hausdorff_loss_pallas.1} parent=0 // pred_fallthru
    _
  // Predicated region
  $region10: #{hausdorff_loss_pallas.1} parent=0 // pred_check
    _
  $region11: #{hausdorff_loss_pallas.1} parent=0 // pred_check_branch
    %26 = sbr.rel (0) target = $region13
  $region12: #{hausdorff_loss_pallas.1} parent=0 // pred_region
    %s27 = sadd.s32 0, 0
    %p28 = scmp.lt.s32.totalorder %s27, 0
    %s29 = scalar_select %p28, %s27, 0
    %s30 = smul.addr %s29, 4
    %s31 = scalar_lea.vmem %s2, %s30
    %s32 = sadd.s32 0, 0
  $region13: #{hausdorff_loss_pallas.1} parent=0 // pred_fallthru
    _
  // Predicated region
  $region14: #{hausdorff_loss_pallas.1} parent=0 // pred_check
    _
  $region15: #{hausdorff_loss_pallas.1} parent=0 // pred_check_branch
    %34 = sbr.rel (0) target = $region17
  $region16: #{hausdorff_loss_pallas.1} parent=0 // pred_region
    %s35 = sadd.s32 0, 0
    %p36 = scmp.lt.s32.totalorder %s35, 0
    %s37 = scalar_select %p36, %s35, 0
    %s38 = smul.addr %s37, 4
    %s39 = scalar_lea.vmem %s3, %s38
    %s40 = sadd.s32 0, 0
  $region17: #{hausdorff_loss_pallas.1} parent=0 // pred_fallthru
    _
  %s41 = sadd.s32 0, 0
  %p42 = scmp.lt.s32.totalorder %s41, 0
  %s43 = scalar_select %p42, %s41, 0
  %s44 = smul.addr %s43, 4
  %s45 = scalar_lea.vmem %s0, %s44
  %s46 = sadd.s32 0, 0
  %p47 = scmp.lt.s32.totalorder %s46, 0
  %s48 = scalar_select %p47, %s46, 0
  %s49 = smul.addr %s48, 4
  %s50 = scalar_lea.vmem %s1, %s49
  %s51 = sadd.s32 0, 0
  %p52 = scmp.lt.s32.totalorder %s51, 0
  %s53 = scalar_select %p52, %s51, 0
  %s54 = smul.addr %s53, 4
  %s55 = scalar_lea.vmem %s2, %s54
  %s56 = sadd.s32 0, 0
  %p57 = scmp.lt.s32.totalorder %s56, 0
  %s58 = scalar_select %p57, %s56, 0
  %s59 = smul.addr %s58, 4
  %s60 = scalar_lea.vmem %s3, %s59
  %s61 = sadd.s32 0, 0
  %p62 = scmp.lt.s32.totalorder %s61, 0
  %s63 = scalar_select %p62, %s61, 0
  %s64 = smul.addr %s63, 4
  %s65 = scalar_lea.vmem %s0, %s64
  %s66 = sadd.s32 0, 0
  %s67 = sadd.s32 0, 0
  %p68 = scmp.lt.s32.totalorder %s67, 0
  %s69 = scalar_select %p68, %s67, 0
  %s70 = smul.addr %s69, 4
  %s71 = scalar_lea.vmem %s1, %s70
  %s72 = sadd.s32 0, 0
  %s73 = sadd.s32 0, 0
  %p74 = scmp.lt.s32.totalorder %s73, 0
  %s75 = scalar_select %p74, %s73, 0
  %s76 = smul.addr %s75, 4
  %s77 = scalar_lea.vmem %s2, %s76
  %s78 = sadd.s32 0, 0
  %s79 = sadd.s32 0, 0
  %p80 = scmp.lt.s32.totalorder %s79, 0
  %s81 = scalar_select %p80, %s79, 0
  %s82 = smul.addr %s81, 4
  %s83 = scalar_lea.vmem %s3, %s82
  %s84 = sadd.s32 0, 0
  %v85 = vld [vmem:[%s65] sm:$0xf]
  %v86 = vld [vmem:[%s71] sm:$0xf]
  %v87 = vsub.f32 %v85, %v86
  %v88 = vmul.f32 %v87, %v87
  %v89 = vld [vmem:[%s77] sm:$0xf]
  %v90 = vld [vmem:[%s83] sm:$0xf]
  %v91 = vadd.f32 %v89, %v90
  %v92 = vmul.f32 %v88, %v91
  %p93 = scmp.eq.s32.totalorder 0, 0
  // Predicated region
  $region18: #{hausdorff_loss_pallas.1} parent=0 // pred_check
    %p94 = pneg %p93
  $region19: #{hausdorff_loss_pallas.1} parent=0 // pred_check_branch
    %96 = sbr.rel (%p94) target = $region21
  $region20: #{hausdorff_loss_pallas.1} parent=0 // pred_region
    %v97 = vlaneseq
    %vm98 = vcmp.ge.s32.totalorder %v97, 0
    %vm99 = vcmp.lt.s32.totalorder %v97, 512
    %vm100 = vmand %vm98, %vm99
    %101 = vst.msk [vmem:[#allocation2] sm:$0xf] %vm100, %v92
  $region21: #{hausdorff_loss_pallas.1} parent=0 // pred_fallthru
    _
  %p102 = scmp.ne.s32.totalorder 0, 0
  // Predicated region
  $region22: #{hausdorff_loss_pallas.1} parent=0 // pred_check
    %p103 = pneg %p102
  $region23: #{hausdorff_loss_pallas.1} parent=0 // pred_check_branch
    %105 = sbr.rel (%p103) target = $region25
  $region24: #{hausdorff_loss_pallas.1} parent=0 // pred_region
    %v106 = vld [vmem:[#allocation2] sm:$0xf]
    %v107 = vadd.f32 %v106, %v92
    %v108 = vlaneseq
    %vm109 = vcmp.ge.s32.totalorder %v108, 0
    %vm110 = vcmp.lt.s32.totalorder %v108, 512
    %vm111 = vmand %vm109, %vm110
    %112 = vst.msk [vmem:[#allocation2] sm:$0xf] %vm111, %v107
  $region25: #{hausdorff_loss_pallas.1} parent=0 // pred_fallthru
    _
  // Predicated region
  $region26: #{hausdorff_loss_pallas.1} parent=0 // pred_check
    %p113 = pneg %p93
  $region27: #{hausdorff_loss_pallas.1} parent=0 // pred_check_branch
    %115 = sbr.rel (%p113) target = $region29
  $region28: #{hausdorff_loss_pallas.1} parent=0 // pred_region
    %v116 = vld [vmem:[#allocation2] sm:$0xf]
    %v118 = vlaneseq
    %v119 = vshrl.u32 %v118, 7
    %v120 = vsub.s32 0, %v119
    %v121 = vrot.slane %v116, %v120
    %v122 = vlaneseq
    %v123 = vshrl.u32 %v122, 7
    %v124 = vsub.s32 1, %v123
    %v125 = vrot.slane %v116, %v124
    %v126 = vlaneseq
    %v127 = vshrl.u32 %v126, 7
    %v128 = vsub.s32 2, %v127
    %v129 = vrot.slane %v116, %v128
    %v130 = vlaneseq
    %v131 = vshrl.u32 %v130, 7
    %v132 = vsub.s32 3, %v131
    %v133 = vrot.slane %v116, %v132
    %vm138 = vcmask 1040384
    %v139 = vsel %vm138, %v121, 0.0
    %v140 = vsel %vm138, %v125, 0.0
    %v141 = vadd.f32 %v139, %v140
    %v142 = vsel %vm138, %v129, 0.0
    %v143 = vadd.f32 %v141, %v142
    %v144 = vsel %vm138, %v133, 0.0
    %v145 = vadd.f32 %v143, %v144
    %146 = vadd.xlane.f32.xlu0 %v145
    %v147 = vpop.xlane.xlu0 %146
    %v148 = vrot.slane %v147, 4
    %v149 = vadd.f32 %v147, %v148
    %v150 = vrot.slane %v149, 2
    %v151 = vadd.f32 %v149, %v150
    %v152 = vrot.slane %v151, 1
    %v153 = vadd.f32 %v151, %v152
    %s154 = vtos %v153
    %v155 = vstv %s154
    %156 = vst [vmem:[%s4] sm:$0xff] %v155
  $region29: #{hausdorff_loss_pallas.1} parent=0 // pred_fallthru
    _
  // Predicated region
  $region30: #{hausdorff_loss_pallas.1} parent=0 // pred_check
    _
  $region31: #{hausdorff_loss_pallas.1} parent=0 // pred_check_branch
    %158 = sbr.rel (0) target = $region33
  $region32: #{hausdorff_loss_pallas.1} parent=0 // pred_region
    _
  $region33: #{hausdorff_loss_pallas.1} parent=0 // pred_fallthru
    _
  // Predicated region
  $region34: #{hausdorff_loss_pallas.1} parent=0 // pred_check
    _
  $region35: #{hausdorff_loss_pallas.1} parent=0 // pred_check_branch
    %160 = sbr.rel (0) target = $region37
  $region36: #{hausdorff_loss_pallas.1} parent=0 // pred_region
    _
  $region37: #{hausdorff_loss_pallas.1} parent=0 // pred_fallthru
    _

</llo_original>
